<compile_context>
chip_gen: v7x
topology: tpu7x:2x2x1
jax: 0.10.0
libtpu: 0.0.40
codegen_flags: <defaults>
</compile_context>

<pallas_src>
import jax
import jax.numpy as jnp
from jax.experimental import pallas as pl
from jax.experimental.pallas import tpu as pltpu

LANES = 128
SUBLANES = 8
MAX_BLK_ROWS = 4096   # 4096 x 128 x 4B = 2 MiB per f32 input block
NUM_CORES = 2         # megacore split for v7x; harmless on single-TC chips


def _cdiv(a, b):
    return -(-a // b)


def _round_up(a, b):
    return _cdiv(a, b) * b


def _dice_partial_kernel(x_ref, t_ref, o_ref):
    """Accumulate partial sums of (sig(x)*t, sig(x), t) into a (1,3,8,128) plane."""
    # Per-core accumulator init on the first step of the reduction axis.
    @pl.when(pl.program_id(1) == 0)
    def _():
        o_ref[...] = jnp.zeros_like(o_ref)

    x = x_ref[...].astype(jnp.float32)
    t = t_ref[...].astype(jnp.float32)
    s = jax.nn.sigmoid(x)

    def fold(v):
        # (blk_rows, 128) -> (blk_rows//8, 8, 128) -> elementwise adds (VPU),
        # collapsing the big block to a single (8, 128) vreg before storing.
        return jnp.sum(v.reshape(-1, SUBLANES, LANES), axis=0)

    o_ref[0, 0, :, :] += fold(s * t)   # intersection terms
    o_ref[0, 1, :, :] += fold(s)       # sum of sigmoid(inputs)
    o_ref[0, 2, :, :] += fold(t)       # sum of targets


def dice_loss(inputs, targets, smooth=1.0):
    """Pallas implementation of DiceLoss.forward (returns a scalar)."""
    x = jnp.ravel(inputs)
    t = jnp.ravel(targets)
    # Stream floating dtypes natively; cast bool/int once in the wrapper.
    if not jnp.issubdtype(x.dtype, jnp.floating):
        x = x.astype(jnp.float32)
    if not jnp.issubdtype(t.dtype, jnp.floating):
        t = t.astype(jnp.float32)
    n = x.shape[0]

    # Rows of 128 lanes, rounded to a sublane multiple. Block rows are chosen
    # so blocks are as large as possible while padding waste stays at most a
    # few sublane rows per core.
    rows = _round_up(_cdiv(n, LANES), SUBLANES)
    rows_per_core = _round_up(_cdiv(rows, NUM_CORES), SUBLANES)
    steps = _cdiv(rows_per_core, MAX_BLK_ROWS)
    blk_rows = _round_up(_cdiv(rows_per_core, steps), SUBLANES)
    rows_pad = NUM_CORES * steps * blk_rows
    n_pad = rows_pad * LANES
    pad = n_pad - n
    if pad > 0:
        # sigmoid(-30) ~ 9e-14 and target pad == 0, so padding is negligible.
        x = jnp.pad(x, (0, pad), constant_values=-30.0)
        t = jnp.pad(t, (0, pad), constant_values=0.0)

    x2 = x.reshape(rows_pad, LANES)
    t2 = t.reshape(rows_pad, LANES)

    out_bytes = NUM_CORES * 3 * SUBLANES * LANES * 4
    partials = pl.pallas_call(
        _dice_partial_kernel,
        out_shape=jax.ShapeDtypeStruct((NUM_CORES, 3, SUBLANES, LANES), jnp.float32),
        grid_spec=pltpu.PrefetchScalarGridSpec(
            num_scalar_prefetch=0,
            grid=(NUM_CORES, steps),
            in_specs=[
                pl.BlockSpec((blk_rows, LANES), lambda c, i: (c * steps + i, 0)),
                pl.BlockSpec((blk_rows, LANES), lambda c, i: (c * steps + i, 0)),
            ],
            out_specs=pl.BlockSpec(
                (1, 3, SUBLANES, LANES), lambda c, i: (c, 0, 0, 0)
            ),
        ),
        compiler_params=pltpu.CompilerParams(
            dimension_semantics=("parallel", "arbitrary"),
        ),
        cost_estimate=pl.CostEstimate(
            flops=5 * n_pad,
            transcendentals=n_pad,
            bytes_accessed=(x2.size * x2.dtype.itemsize
                            + t2.size * t2.dtype.itemsize
                            + out_bytes),
        ),
    )(x2, t2)

    # Tiny epilogue in the wrapper: 3 sums over (2, 8, 128) planes + scalar math.
    sums = jnp.sum(partials, axis=(0, 2, 3))
    intersection, sum_s, sum_t = sums[0], sums[1], sums[2]
    dice = (2.0 * intersection + smooth) / (sum_s + sum_t + smooth)
    return 1.0 - dice


def _dice_loss_ref(inputs, targets, smooth=1.0):
    s = jax.nn.sigmoid(inputs.astype(jnp.float32)).ravel()
    t = targets.astype(jnp.float32).ravel()
    inter = jnp.sum(s * t)
    dice = (2.0 * inter + smooth) / (jnp.sum(s) + jnp.sum(t) + smooth)
    return 1.0 - dice


if __name__ == "__main__":
    key = jax.random.PRNGKey(0)
    k1, k2 = jax.random.split(key)
    # NCHW like the PyTorch conv convention: (batch=2, channels=4, 16, 16)
    x = jax.random.normal(k1, (2, 4, 16, 16), dtype=jnp.float32)
    tgt = (jax.random.uniform(k2, (2, 4, 16, 16)) > 0.5).astype(jnp.float32)

    loss = jax.jit(dice_loss)(x, tgt)
    loss = jax.block_until_ready(loss)

    ref = _dice_loss_ref(x, tgt, smooth=1.0)
    assert jnp.allclose(loss, ref, atol=1e-5, rtol=1e-5), (loss, ref)
    print("KERNEL_OK")
</pallas_src>

<mosaic_0001>
module attributes {stable_mosaic.version = 11 : i64} {
  func.func @_dice_partial_kernel(%arg0: i32, %arg1: i32, %arg2: memref<8x128xf32, #tpu.memory_space<vmem>>, %arg3: memref<8x128xf32, #tpu.memory_space<vmem>>, %arg4: memref<1x3x8x128xf32, #tpu.memory_space<vmem>>) attributes {dimension_semantics = [#tpu.dimension_semantics<parallel>, #tpu.dimension_semantics<arbitrary>], iteration_bounds = array<i64: 2, 1>, scalar_prefetch = 0 : i64, scratch_operands = 0 : i64, tpu.core_type = #tpu.core_type<tc>, window_params = [{transform_indices = @transform_0, window_bounds = array<i64: 8, 128>}, {transform_indices = @transform_1, window_bounds = array<i64: 8, 128>}, {transform_indices = @transform_2, window_bounds = array<i64: 1, 3, 8, 128>}]} {
    %c0_i32 = arith.constant 0 : i32
    %0 = arith.cmpi eq, %arg1, %c0_i32 : i32
    %1 = arith.extui %0 : i1 to i32
    %c0_i32_0 = arith.constant 0 : i32
    %2 = arith.cmpi ne, %1, %c0_i32_0 : i32
    scf.if %2 {
      %cst_29 = arith.constant 0.000000e+00 : f32
      %35 = vector.broadcast %cst_29 : f32 to vector<1x3x8x128xf32>
      %c0_30 = arith.constant 0 : index
      %c0_31 = arith.constant 0 : index
      %c0_32 = arith.constant 0 : index
      %c0_33 = arith.constant 0 : index
      %36 = vector.load %arg4[%c0_30, %c0_31, %c0_32, %c0_33] : memref<1x3x8x128xf32, #tpu.memory_space<vmem>>, vector<1x3x8x128xf32>
      tpu.vector_store %arg4[%c0_30, %c0_31, %c0_32, %c0_33], %35 {strides = array<i32>} : memref<1x3x8x128xf32, #tpu.memory_space<vmem>>, vector<1x3x8x128xf32>,
    } else {
    }
    %c0 = arith.constant 0 : index
    %c0_1 = arith.constant 0 : index
    %3 = vector.load %arg2[%c0, %c0_1] : memref<8x128xf32, #tpu.memory_space<vmem>>, vector<8x128xf32>
    %c0_2 = arith.constant 0 : index
    %c0_3 = arith.constant 0 : index
    %4 = vector.load %arg3[%c0_2, %c0_3] : memref<8x128xf32, #tpu.memory_space<vmem>>, vector<8x128xf32>
    %5 = arith.negf %3 : vector<8x128xf32>
    %6 = math.exp %5 : vector<8x128xf32>
    %cst = arith.constant 1.000000e+00 : f32
    %7 = vector.broadcast %cst : f32 to vector<8x128xf32>
    %8 = arith.addf %7, %6 : vector<8x128xf32>
    %9 = arith.divf %7, %8 : vector<8x128xf32>
    %c0_4 = arith.constant 0 : index
    %c0_5 = arith.constant 0 : index
    %c0_6 = arith.constant 0 : index
    %c0_7 = arith.constant 0 : index
    %10 = vector.load %arg4[%c0_4, %c0_5, %c0_6, %c0_7] : memref<1x3x8x128xf32, #tpu.memory_space<vmem>>, vector<1x1x8x128xf32>
    %11 = vector.shape_cast %10 : vector<1x1x8x128xf32> to vector<8x128xf32>
    %12 = arith.mulf %9, %4 : vector<8x128xf32>
    %13 = vector.shape_cast %12 : vector<8x128xf32> to vector<1x8x128xf32>
    %cst_8 = arith.constant dense<0.000000e+00> : vector<8x128xf32>
    %14 = vector.multi_reduction <add>, %13, %cst_8 [0] : vector<1x8x128xf32> to vector<8x128xf32>
    %15 = arith.addf %11, %14 : vector<8x128xf32>
    %c0_9 = arith.constant 0 : index
    %c0_10 = arith.constant 0 : index
    %c0_11 = arith.constant 0 : index
    %c0_12 = arith.constant 0 : index
    %16 = vector.load %arg4[%c0_9, %c0_10, %c0_11, %c0_12] : memref<1x3x8x128xf32, #tpu.memory_space<vmem>>, vector<1x1x8x128xf32>
    %17 = vector.shape_cast %16 : vector<1x1x8x128xf32> to vector<8x128xf32>
    %18 = vector.shape_cast %15 : vector<8x128xf32> to vector<1x1x8x128xf32>
    tpu.vector_store %arg4[%c0_9, %c0_10, %c0_11, %c0_12], %18 {strides = array<i32>} : memref<1x3x8x128xf32, #tpu.memory_space<vmem>>, vector<1x1x8x128xf32>,
    %c0_13 = arith.constant 0 : index
    %c1 = arith.constant 1 : index
    %c0_14 = arith.constant 0 : index
    %c0_15 = arith.constant 0 : index
    %19 = vector.load %arg4[%c0_13, %c1, %c0_14, %c0_15] : memref<1x3x8x128xf32, #tpu.memory_space<vmem>>, vector<1x1x8x128xf32>
    %20 = vector.shape_cast %19 : vector<1x1x8x128xf32> to vector<8x128xf32>
    %21 = vector.shape_cast %9 : vector<8x128xf32> to vector<1x8x128xf32>
    %cst_16 = arith.constant dense<0.000000e+00> : vector<8x128xf32>
    %22 = vector.multi_reduction <add>, %21, %cst_16 [0] : vector<1x8x128xf32> to vector<8x128xf32>
    %23 = arith.addf %20, %22 : vector<8x128xf32>
    %c0_17 = arith.constant 0 : index
    %c1_18 = arith.constant 1 : index
    %c0_19 = arith.constant 0 : index
    %c0_20 = arith.constant 0 : index
    %24 = vector.load %arg4[%c0_17, %c1_18, %c0_19, %c0_20] : memref<1x3x8x128xf32, #tpu.memory_space<vmem>>, vector<1x1x8x128xf32>
    %25 = vector.shape_cast %24 : vector<1x1x8x128xf32> to vector<8x128xf32>
    %26 = vector.shape_cast %23 : vector<8x128xf32> to vector<1x1x8x128xf32>
    tpu.vector_store %arg4[%c0_17, %c1_18, %c0_19, %c0_20], %26 {strides = array<i32>} : memref<1x3x8x128xf32, #tpu.memory_space<vmem>>, vector<1x1x8x128xf32>,
    %c0_21 = arith.constant 0 : index
    %c2 = arith.constant 2 : index
    %c0_22 = arith.constant 0 : index
    %c0_23 = arith.constant 0 : index
    %27 = vector.load %arg4[%c0_21, %c2, %c0_22, %c0_23] : memref<1x3x8x128xf32, #tpu.memory_space<vmem>>, vector<1x1x8x128xf32>
    %28 = vector.shape_cast %27 : vector<1x1x8x128xf32> to vector<8x128xf32>
    %29 = vector.shape_cast %4 : vector<8x128xf32> to vector<1x8x128xf32>
    %cst_24 = arith.constant dense<0.000000e+00> : vector<8x128xf32>
    %30 = vector.multi_reduction <add>, %29, %cst_24 [0] : vector<1x8x128xf32> to vector<8x128xf32>
    %31 = arith.addf %28, %30 : vector<8x128xf32>
    %c0_25 = arith.constant 0 : index
    %c2_26 = arith.constant 2 : index
    %c0_27 = arith.constant 0 : index
    %c0_28 = arith.constant 0 : index
    %32 = vector.load %arg4[%c0_25, %c2_26, %c0_27, %c0_28] : memref<1x3x8x128xf32, #tpu.memory_space<vmem>>, vector<1x1x8x128xf32>
    %33 = vector.shape_cast %32 : vector<1x1x8x128xf32> to vector<8x128xf32>
    %34 = vector.shape_cast %31 : vector<8x128xf32> to vector<1x1x8x128xf32>
    tpu.vector_store %arg4[%c0_25, %c2_26, %c0_27, %c0_28], %34 {strides = array<i32>} : memref<1x3x8x128xf32, #tpu.memory_space<vmem>>, vector<1x1x8x128xf32>,
    return
  }
  func.func @transform_0(%arg0: i32, %arg1: i32) -> (i32, i32) {
    %c1_i32 = arith.constant 1 : i32
    %0 = arith.muli %arg0, %c1_i32 : i32
    %1 = arith.addi %0, %arg1 : i32
    %c0_i32 = arith.constant 0 : i32
    %c0_i32_0 = arith.constant 0 : i32
    return %1, %c0_i32 : i32, i32
  }
  func.func @transform_1(%arg0: i32, %arg1: i32) -> (i32, i32) {
    %c1_i32 = arith.constant 1 : i32
    %0 = arith.muli %arg0, %c1_i32 : i32
    %1 = arith.addi %0, %arg1 : i32
    %c0_i32 = arith.constant 0 : i32
    %c0_i32_0 = arith.constant 0 : i32
    return %1, %c0_i32 : i32, i32
  }
  func.func @transform_2(%arg0: i32, %arg1: i32) -> (i32, i32, i32, i32) {
    %c0_i32 = arith.constant 0 : i32
    %c0_i32_0 = arith.constant 0 : i32
    %c0_i32_1 = arith.constant 0 : i32
    %c0_i32_2 = arith.constant 0 : i32
    return %arg0, %c0_i32, %c0_i32_0, %c0_i32_1 : i32, i32, i32, i32
  }
}

</mosaic_0001>

<llo_original>
// kernel: dice_loss.1
$region0: #{dice_loss.1}
  #allocation0 [shape = 'u32[]', space=smem, size = 0x4, offset = 0x4, fixed_abs, tag = 'smem constant byte address 0x4 - core index']
  #allocation1 [shape = 'u32[144,128]{1,0:T(1,128)}', space=vmem, size = 0x12000, scoped, tag = 'internal scratch']
  %s0 = inlined_call_operand.vmem [shape: f32[16,128], index: 0, kind: input, shape index: {}]
  %s1 = inlined_call_operand.vmem [shape: f32[16,128], index: 1, kind: input, shape index: {}]
  %s2 = inlined_call_operand.vmem [shape: f32[2,3,8,128], index: 2, kind: output, shape index: {}]
  %s3 = sld [smem:[#allocation0]]
  $region45: #{dice_loss.1} parent=0
    _
  %s5 = ssub.s32 1, %s3
  %s6 = scalar_select 0, %s5, %s3
  loop: start=0, step=1, limit=4
  $region2: #{dice_loss.1} parent=0 // loop_pre_header
    _
  $region3: #{dice_loss.1} parent=0 // loop_header
    %s8 = sphi 0, %s12
    %p9 = scmp.ge.s32.totalorder %s8, 4
    %s15 = sphi 0, %s27
    %s16 = sphi 0, %s23
    %s17 = sphi 0, %s15
    %s18 = sphi 0, %s16
    %s19 = sphi 0, %s17
    %s20 = sphi 0, %s18
    %s32 = sphi 0, %s34
    %s35 = sphi 0, %s32
    %s36 = sphi 0, %s35
    %s52 = sphi 0, %s36
    %s60 = sphi 0, %s62
    %s63 = sphi 0, %s60
    %s64 = sphi 0, %s63
    %s80 = sphi 0, %s64
    %s86 = sphi 0, %s88
    %s89 = sphi 0, %s86
    %s90 = sphi 0, %s89
    %s106 = sphi 0, %s90
  $region4: #{dice_loss.1} parent=0 // loop_header_branch
    %11 = sbr.rel (%p9) target = $region8
  $region5: #{dice_loss.1} parent=0 // loop_body
    %s13 = ssub.s32 %s8, 1
    %s14 = ssub.s32 %s8, 2
    %s21 = sadd.s32 1, %s16
    %p22 = scmp.ge.s32.totalorder %s21, 1
    %s23 = scalar_select %p22, 0, %s21
    %s24 = sadd.s32 1, %s15
    %s25 = scalar_select %p22, %s24, %s15
    %p26 = scmp.ge.s32.totalorder %s25, 2
    %s27 = scalar_select %p26, 0, %s25
    %s28 = sadd.s32 %s15, %s16
    %s29 = sadd.s32 %s27, %s23
    %s30 = ssub.s32 %s28, %s29
    %p31 = scmp.eq.s32.totalorder %s30, 0
    %s33 = sadd.s32 %s32, 1
    %s34 = scalar_select %p31, %s32, %s33
    %p37 = pneg %p31
    %p38 = scmp.eq.s32.totalorder %s8, 1
    %p39 = por %p37, %p38
    %p40 = scmp.ne.s32.totalorder %s32, %s35
    %p41 = scmp.eq.s32.totalorder %s8, 0
    %p42 = por %p40, %p41
    %p43 = scmp.ne.s32.totalorder %s32, %s35
    %p44 = scmp.eq.s32.totalorder %s13, 1
    %p45 = por %p43, %p44
    %p46 = scmp.ne.s32.totalorder %s35, %s36
    %p47 = scmp.eq.s32.totalorder %s13, 0
    %p48 = por %p46, %p47
    %p49 = scmp.ne.s32.totalorder %s35, %s36
    %p50 = scmp.eq.s32.totalorder %s14, 1
    %p51 = por %p49, %p50
    %p53 = scmp.ne.s32.totalorder %s36, %s52
    %p54 = scmp.eq.s32.totalorder %s14, 0
    %p55 = por %p53, %p54
    %s56 = sadd.s32 %s15, %s16
    %s57 = sadd.s32 %s27, %s23
    %s58 = ssub.s32 %s56, %s57
    %p59 = scmp.eq.s32.totalorder %s58, 0
    %s61 = sadd.s32 %s60, 1
    %s62 = scalar_select %p59, %s60, %s61
    %p65 = pneg %p59
    %p66 = scmp.eq.s32.totalorder %s8, 1
    %p67 = por %p65, %p66
    %p68 = scmp.ne.s32.totalorder %s60, %s63
    %p69 = scmp.eq.s32.totalorder %s8, 0
    %p70 = por %p68, %p69
    %p71 = scmp.ne.s32.totalorder %s60, %s63
    %p72 = scmp.eq.s32.totalorder %s13, 1
    %p73 = por %p71, %p72
    %p74 = scmp.ne.s32.totalorder %s63, %s64
    %p75 = scmp.eq.s32.totalorder %s13, 0
    %p76 = por %p74, %p75
    %p77 = scmp.ne.s32.totalorder %s63, %s64
    %p78 = scmp.eq.s32.totalorder %s14, 1
    %p79 = por %p77, %p78
    %p81 = scmp.ne.s32.totalorder %s64, %s80
    %p82 = scmp.eq.s32.totalorder %s14, 0
    %p83 = por %p81, %p82
    %s84 = ssub.s32 %s15, %s27
    %p85 = scmp.eq.s32.totalorder %s84, 0
    %s87 = sadd.s32 %s86, 1
    %s88 = scalar_select %p85, %s86, %s87
    %p91 = pneg %p85
    %p92 = scmp.eq.s32.totalorder %s8, 1
    %p93 = por %p91, %p92
    %p94 = scmp.ne.s32.totalorder %s86, %s89
    %p95 = scmp.eq.s32.totalorder %s8, 0
    %p96 = por %p94, %p95
    %p97 = scmp.ne.s32.totalorder %s86, %s89
    %p98 = scmp.eq.s32.totalorder %s13, 1
    %p99 = por %p97, %p98
    %p100 = scmp.ne.s32.totalorder %s89, %s90
    %p101 = scmp.eq.s32.totalorder %s13, 0
    %p102 = por %p100, %p101
    %p103 = scmp.ne.s32.totalorder %s89, %s90
    %p104 = scmp.eq.s32.totalorder %s14, 1
    %p105 = por %p103, %p104
    %p107 = scmp.ne.s32.totalorder %s90, %s106
    %p108 = scmp.eq.s32.totalorder %s14, 0
    %p109 = por %p107, %p108
    %p110 = scmp.le.s32.totalorder 1, %s8
    %p111 = scmp.lt.s32.totalorder %s8, 3
    %p112 = pnand %p110, %p111
    %p113 = pneg %p112
    // Predicated region
    $region9: #{dice_loss.1} parent=5 // pred_check
      _
    $region10: #{dice_loss.1} parent=5 // pred_check_branch
      %115 = sbr.rel (%p112) target = $region12
    $region11: #{dice_loss.1} parent=5 // pred_region
      %s116 = ssub.s32 %s8, 1
    $region12: #{dice_loss.1} parent=5 // pred_fallthru
      _
    %p117 = scmp.lt.s32.totalorder %s8, 2
    // Predicated region
    $region13: #{dice_loss.1} parent=5 // pred_check
      %p118 = pneg %p117
    $region14: #{dice_loss.1} parent=5 // pred_check_branch
      %120 = sbr.rel (%p118) target = $region16
    $region15: #{dice_loss.1} parent=5 // pred_region
      // Predicated region
      $region17: #{dice_loss.1} parent=15 // pred_check
        %p121 = pneg %p42
      $region18: #{dice_loss.1} parent=15 // pred_check_branch
        %123 = sbr.rel (%p121) target = $region20
      $region19: #{dice_loss.1} parent=15 // pred_region
        %s124 = sadd.s32 %s15, %s16
        %p125 = scmp.lt.s32.totalorder %s124, 1
        %s126 = scalar_select %p125, %s124, 1
        %s127 = smul.addr %s126, 8
        %s128 = scalar_lea.vmem %s0, %s127
        %s129 = sadd.s32 %s15, %s16
      $region20: #{dice_loss.1} parent=15 // pred_fallthru
        _
      // Predicated region
      $region21: #{dice_loss.1} parent=15 // pred_check
        %p130 = pneg %p70
      $region22: #{dice_loss.1} parent=15 // pred_check_branch
        %132 = sbr.rel (%p130) target = $region24
      $region23: #{dice_loss.1} parent=15 // pred_region
        %s133 = sadd.s32 %s15, %s16
        %p134 = scmp.lt.s32.totalorder %s133, 1
        %s135 = scalar_select %p134, %s133, 1
        %s136 = smul.addr %s135, 8
        %s137 = scalar_lea.vmem %s1, %s136
        %s138 = sadd.s32 %s15, %s16
      $region24: #{dice_loss.1} parent=15 // pred_fallthru
        _
    $region16: #{dice_loss.1} parent=5 // pred_fallthru
      _
    %p139 = scmp.le.s32.totalorder 1, %s8
    %p140 = scmp.lt.s32.totalorder %s8, 3
    %p141 = pnand %p139, %p140
    %p142 = pneg %p141
    // Predicated region
    $region25: #{dice_loss.1} parent=5 // pred_check
      _
    $region26: #{dice_loss.1} parent=5 // pred_check_branch
      %144 = sbr.rel (%p141) target = $region28
    $region27: #{dice_loss.1} parent=5 // pred_region
      %s145 = ssub.s32 %s8, 1
      %s146 = sadd.s32 %s17, %s18
      %p147 = scmp.lt.s32.totalorder %s146, 1
      %s148 = scalar_select %p147, %s146, 1
      %s149 = smul.addr %s148, 8
      %s150 = scalar_lea.vmem %s0, %s149
      %p151 = pneg %p48
      %p152 = pneg %p45
      %s153 = sadd.s32 %s17, %s18
      %p154 = scmp.lt.s32.totalorder %s153, 1
      %s155 = scalar_select %p154, %s153, 1
      %s156 = smul.addr %s155, 8
      %s157 = scalar_lea.vmem %s1, %s156
      %p158 = pneg %p76
      %p159 = pneg %p73
      %p160 = pneg %p102
      %p161 = pneg %p99
      %p162 = scmp.lt.s32.totalorder %s17, 1
      %s163 = scalar_select %p162, %s17, 1
      %s164 = smul.addr %s163, 3
      %s165 = smul.addr %s164, 8
      %s166 = scalar_lea.vmem %s2, %s165
      %s167 = sadd.s32 %s17, %s18
      %p168 = scmp.lt.s32.totalorder %s167, 1
      %s169 = scalar_select %p168, %s167, 1
      %s170 = smul.addr %s169, 8
      %s171 = scalar_lea.vmem %s0, %s170
      %s172 = sadd.s32 %s17, %s18
      %s173 = sadd.s32 %s17, %s18
      %p174 = scmp.lt.s32.totalorder %s173, 1
      %s175 = scalar_select %p174, %s173, 1
      %s176 = smul.addr %s175, 8
      %s177 = scalar_lea.vmem %s1, %s176
      %s178 = sadd.s32 %s17, %s18
      %p179 = scmp.lt.s32.totalorder %s17, 1
      %s180 = scalar_select %p179, %s17, 1
      %s181 = smul.addr %s180, 3
      %s182 = smul.addr %s181, 8
      %s183 = scalar_lea.vmem %s2, %s182
      %p184 = scmp.eq.s32.totalorder %s18, 0
      // Predicated region
      $region29: #{dice_loss.1} parent=27 // pred_check
        %p185 = pneg %p184
      $region30: #{dice_loss.1} parent=27 // pred_check_branch
        %187 = sbr.rel (%p185) target = $region32
      $region31: #{dice_loss.1} parent=27 // pred_region
        %188 = vst [vmem:[%s183] sm:$0xff] 0.0
        %189 = vst [vmem:[%s183 + $0x8] sm:$0xff] 0.0
        %190 = vst [vmem:[%s183 + $0x10] sm:$0xff] 0.0
      $region32: #{dice_loss.1} parent=27 // pred_fallthru
        _
      %v191 = vld [vmem:[%s171] sm:$0xff]
      %v192 = vld [vmem:[%s177] sm:$0xff]
      %v193 = vxor.u32 %v191, 2147483648
      %v194 = vmul.f32 %v193, 1.442695
      %v195 = vpow.pop %v194
      %v196 = vadd.f32 %v195, 1.0
      %v197 = vrcp.pop %v196
      %v198 = vmul.f32 1.0, %v197
      %v199 = vld [vmem:[%s183] sm:$0xff]
      %v200 = vmul.f32 %v198, %v192
      %v201 = vadd.f32 %v200, 0.0
      %v202 = vadd.f32 %v199, %v201
      %203 = vst [vmem:[%s183] sm:$0xff] %v202
      %s204 = scalar_lea.vmem %s183, 8
      %v205 = vld [vmem:[%s204] sm:$0xff]
      %v206 = vadd.f32 %v198, 0.0
      %v207 = vadd.f32 %v205, %v206
      %208 = vst [vmem:[%s204] sm:$0xff] %v207
      %s209 = scalar_lea.vmem %s183, 16
      %v210 = vld [vmem:[%s209] sm:$0xff]
      %v211 = vadd.f32 %v192, 0.0
      %v212 = vadd.f32 %v210, %v211
      %213 = vst [vmem:[%s209] sm:$0xff] %v212
      %p214 = scmp.lt.s32.totalorder %s17, 1
      %s215 = scalar_select %p214, %s17, 1
      %s216 = smul.addr %s215, 3
      %s217 = smul.addr %s216, 8
      %s218 = scalar_lea.vmem %s2, %s217
      // Predicated region
      $region33: #{dice_loss.1} parent=27 // pred_check
        %p219 = pneg %p99
      $region34: #{dice_loss.1} parent=27 // pred_check_branch
        %221 = sbr.rel (%p219) target = $region36
      $region35: #{dice_loss.1} parent=27 // pred_region
        _
      $region36: #{dice_loss.1} parent=27 // pred_fallthru
        _
    $region28: #{dice_loss.1} parent=5 // pred_fallthru
      _
    %p222 = scmp.le.s32.totalorder 2, %s8
    // Predicated region
    $region37: #{dice_loss.1} parent=5 // pred_check
      %p223 = pneg %p222
    $region38: #{dice_loss.1} parent=5 // pred_check_branch
      %225 = sbr.rel (%p223) target = $region40
    $region39: #{dice_loss.1} parent=5 // pred_region
      %s226 = ssub.s32 %s8, 2
      // Predicated region
      $region41: #{dice_loss.1} parent=39 // pred_check
        %p227 = pneg %p105
      $region42: #{dice_loss.1} parent=39 // pred_check_branch
        %229 = sbr.rel (%p227) target = $region44
      $region43: #{dice_loss.1} parent=39 // pred_region
        %p230 = scmp.lt.s32.totalorder %s19, 1
        %s231 = scalar_select %p230, %s19, 1
        %s232 = smul.addr %s231, 3
        %s233 = smul.addr %s232, 8
        %s234 = scalar_lea.vmem %s2, %s233
      $region44: #{dice_loss.1} parent=39 // pred_fallthru
        _
    $region40: #{dice_loss.1} parent=5 // pred_fallthru
      _
  $region6: #{dice_loss.1} parent=0 // loop_footer
    %s12 = sadd.s32 1, %s8
  $region7: #{dice_loss.1} parent=0 // loop_footer_branch
    %7 = sbr.rel target = $region3
  $region8: #{dice_loss.1} parent=0 // loop_exit
    _

</llo_original>
